<compile_context>
chip_gen: v7x
topology: tpu7x:2x2x1
jax: 0.10.0
libtpu: 0.0.40
codegen_flags: <defaults>
</compile_context>

<pallas_src>
import functools

import jax
import jax.numpy as jnp
from jax.experimental import pallas as pl
from jax.experimental.pallas import tpu as pltpu


# Conservative budget for the explicitly sized VMEM arrays of one grid step
# (triple-buffered input block + double-buffered output block + pad scratch +
# max-chain temporaries).  Fits v5e's 16 MiB default scoped VMEM with headroom
# and v6e/v7x's 32 MiB default; no vmem_limit override needed on any generation.
_VMEM_BUDGET_BYTES = 8 * 1024 * 1024


def _pad_value(dtype):
    """PyTorch MaxPool2d pads with -inf; use a dtype-appropriate identity."""
    dtype = jnp.dtype(dtype)
    if jnp.issubdtype(dtype, jnp.floating):
        return float("-inf")
    return int(jnp.iinfo(dtype).min)


def _sublane_align(dtype):
    # Sublane tile: 8 for 32-bit, 16 for 16-bit, 32 for 8-bit dtypes.
    return max(8, 32 // jnp.dtype(dtype).itemsize)


def _pick_tile_nc(nc, per_ch_bytes, budget_bytes=_VMEM_BUDGET_BYTES):
    """Lane-aligned N*C tile: capped at 512 lanes (bounds the k^2 max-chain live
    set), fits the VMEM budget, prefers >= 2 grid steps (v7x megacore + pipeline).
    Tiny / non-128-multiple NC falls back to the full-dim block (still correct,
    just lane-masked); the NCHW wrapper lane-pads large non-multiples instead."""
    if nc <= 128 or nc % 128 != 0:
        return nc
    fallback = None
    for t in (256, 512, 128):
        if nc % t == 0 and t * per_ch_bytes <= budget_bytes:
            if nc // t >= 2:
                return t
            if fallback is None:
                fallback = t
    return fallback if fallback is not None else 128


def _make_maxpool_kernel(H, W, OH, OW, kernel_size, stride, dilation, padding,
                         lpad, pad_val):
    # Extent of the stride-1 "window max" map covering every output tap.
    HS = (OH - 1) * stride + 1
    WS = (OW - 1) * stride + 1
    # Column of padded-image col 0 inside the scratch (scratch keeps the real
    # image at sublane-aligned col `lpad`, so padded col c lives at c - padding + lpad).
    col_base = (lpad - padding) if padding > 0 else 0

    def kernel(x_ref, o_ref, *scratch):
        if padding > 0:
            xp = scratch[0]
            Hp, Wpad, tnc = xp.shape
            dt = xp.dtype
            # Border-strip fills only (no full-scratch fill, no double write).
            xp[pl.ds(0, padding), :, :] = jnp.full((padding, Wpad, tnc), pad_val, dt)
            xp[pl.ds(padding + H, padding), :, :] = jnp.full((padding, Wpad, tnc), pad_val, dt)
            xp[pl.ds(padding, H), pl.ds(0, lpad), :] = jnp.full((H, lpad, tnc), pad_val, dt)
            xp[pl.ds(padding, H), pl.ds(lpad + W, padding), :] = jnp.full(
                (H, padding, tnc), pad_val, dt)
            # Interior copy: leading-dim row offset (free) + sublane-ALIGNED column
            # offset -> plain aligned stores, no shift / masked-store penalty.
            xp[pl.ds(padding, H), pl.ds(lpad, W), :] = x_ref[...]
            src = xp
        else:
            src = x_ref

        # k^2 taps, each a static-offset slice; N*C rides the 128-lane axis so the
        # running max is pure full-vreg VPU work with a bounded live set.
        acc = src[pl.ds(0, HS), pl.ds(col_base, WS), :]
        for ki in range(kernel_size):
            for kj in range(kernel_size):
                if ki == 0 and kj == 0:
                    continue
                tap = src[pl.ds(ki * dilation, HS),
                          pl.ds(col_base + kj * dilation, WS), :]
                acc = jnp.maximum(acc, tap)

        if stride == 1:
            o_ref[...] = acc
        else:
            # Single subsample straight into the output store (strides touch only the
            # leading/sublane axes; lanes stay dense).
            o_ref[...] = acc[::stride, ::stride, :]

    return kernel


def maxpool2d_channels_last(x_cl, *, kernel_size, stride, padding, dilation):
    """MaxPool2d on a channels-last (H, W, NC) array -> (OH, OW, NC).
    Layout-aware callers should use this directly and skip NCHW transposes."""
    H, W, NC = x_cl.shape
    dtype = x_cl.dtype
    itemsize = jnp.dtype(dtype).itemsize
    pad_val = _pad_value(dtype)

    OH = (H + 2 * padding - dilation * (kernel_size - 1) - 1) // stride + 1
    OW = (W + 2 * padding - dilation * (kernel_size - 1) - 1) // stride + 1
    HS = (OH - 1) * stride + 1
    WS = (OW - 1) * stride + 1
    Hp = H + 2 * padding

    align = _sublane_align(dtype)
    lpad = ((padding + align - 1) // align) * align if padding > 0 else 0
    Wpad = lpad + W + padding  # real image at cols [lpad, lpad+W); -inf borders around it

    # TODO(synk): add spatial (H) tiling for very large feature maps; current tiling
    # assumes the full (H, W) plane of one lane-tile fits the per-step VMEM budget.
    per_ch = (3 * H * W            # input block, up to 3 pipeline buffers
              + 2 * OH * OW        # output block, double-buffered
              + (Hp * Wpad if padding > 0 else 0)   # pad scratch
              + 3 * HS * WS) * itemsize              # max-chain temporaries (acc+tap+stage)
    tile_nc = _pick_tile_nc(NC, per_ch)
    grid_steps = NC // tile_nc

    scratch_shapes = []
    if padding > 0:
        scratch_shapes.append(pltpu.VMEM((Hp, Wpad, tile_nc), dtype))

    kernel = _make_maxpool_kernel(H, W, OH, OW, kernel_size, stride, dilation,
                                  padding, lpad, pad_val)

    in_spec = pl.BlockSpec((H, W, tile_nc), lambda i: (0, 0, i))
    if grid_steps >= 3 and hasattr(pl, "Buffered"):
        # Deeper input pipelining hides HBM latency between short compute bodies;
        # only applied when the grid has enough steps (VMEM already budgeted for 3).
        try:
            in_spec = pl.BlockSpec((H, W, tile_nc), lambda i: (0, 0, i),
                                   pipeline_mode=pl.Buffered(3))
        except TypeError:  # older toolchain without pipeline_mode
            in_spec = pl.BlockSpec((H, W, tile_nc), lambda i: (0, 0, i))

    return pl.pallas_call(
        kernel,
        out_shape=jax.ShapeDtypeStruct((OH, OW, NC), dtype),
        grid=(grid_steps,),
        in_specs=[in_spec],
        out_specs=pl.BlockSpec((OH, OW, tile_nc), lambda i: (0, 0, i)),
        scratch_shapes=scratch_shapes,
        compiler_params=pltpu.CompilerParams(
            dimension_semantics=("parallel",),
            # Let XLA fuse the operand's producer (NCHW->channels-last transpose /
            # lane pad) into the Pallas call instead of materializing it in HBM.
            allow_input_fusion=[True]),
        cost_estimate=pl.CostEstimate(
            flops=kernel_size * kernel_size * OH * OW * NC,
            transcendentals=0,
            bytes_accessed=(H * W + OH * OW) * NC * itemsize),
    )(x_cl)


def pooling_block(x, *, kernel_size, stride=1, padding=None, dilation=1):
    """Forward pass of PoolingBlock: MaxPool2d on NCHW input, NCHW output."""
    if x.ndim != 4:
        raise ValueError("expected NCHW input")
    N, C, H, W = x.shape
    if padding is None:
        # Same auto-"same" padding formula as the PyTorch module (square spatial assumed).
        padding = int((H * (stride - 1) + dilation * (kernel_size - 1)) // 2)

    OH = (H + 2 * padding - dilation * (kernel_size - 1) - 1) // stride + 1
    OW = (W + 2 * padding - dilation * (kernel_size - 1) - 1) // stride + 1
    NC = N * C

    # Channels-last view for the kernel; allow_input_fusion on the pallas_call lets
    # XLA fuse this transpose into the operand rather than spend an extra HBM pass.
    x_cl = jnp.transpose(x, (2, 3, 0, 1)).reshape(H, W, NC)

    # Keep output stores lane-dense: pad N*C up to a multiple of 128 when it is large
    # enough for the pad cost to be negligible vs. the pooling HBM traffic.
    NCp = NC
    if NC > 128 and NC % 128 != 0:
        NCp = ((NC + 127) // 128) * 128
        x_cl = jnp.pad(x_cl, ((0, 0), (0, 0), (0, NCp - NC)))

    out_cl = maxpool2d_channels_last(
        x_cl, kernel_size=kernel_size, stride=stride, padding=padding,
        dilation=dilation)
    if NCp != NC:
        out_cl = out_cl[:, :, :NC]

    # NCHW consumers pay one transpose on the (smaller) output; channels-last
    # consumers should call maxpool2d_channels_last directly and skip it.
    return jnp.transpose(out_cl.reshape(OH, OW, N, C), (2, 3, 0, 1))


def _reference_maxpool(x, *, kernel_size, stride=1, padding=None, dilation=1):
    """Pure-JAX reference (reduce_window) for correctness checking."""
    N, C, H, W = x.shape
    if padding is None:
        padding = int((H * (stride - 1) + dilation * (kernel_size - 1)) // 2)
    return jax.lax.reduce_window(
        x, -jnp.inf, jax.lax.max,
        window_dimensions=(1, 1, kernel_size, kernel_size),
        window_strides=(1, 1, stride, stride),
        padding=((0, 0), (0, 0), (padding, padding), (padding, padding)),
        window_dilation=(1, 1, dilation, dilation),
    )


if __name__ == "__main__":
    key = jax.random.PRNGKey(0)
    # Small NCHW shapes consistent with the module (square spatial).
    N, C, H, W = 2, 4, 16, 16
    x = jax.random.normal(key, (N, C, H, W), dtype=jnp.float32)

    configs = [
        dict(kernel_size=3, stride=1, padding=None, dilation=1),  # auto "same" pad=1
        dict(kernel_size=3, stride=1, padding=0, dilation=1),     # no-padding path
        dict(kernel_size=3, stride=1, padding=2, dilation=2),     # dilated window
    ]
    for cfg in configs:
        fwd = jax.jit(functools.partial(pooling_block, **cfg))
        out = jax.block_until_ready(fwd(x))
        ref = _reference_maxpool(x, **cfg)
        assert out.shape == ref.shape, (out.shape, ref.shape)
        assert jnp.allclose(out, ref), f"Pallas maxpool mismatch vs reference: {cfg}"

    print("KERNEL_OK")
</pallas_src>

<mosaic_0001>
module attributes {stable_mosaic.version = 11 : i64} {
  func.func @kernel(%arg0: i32, %arg1: memref<16x16x8xf32, #tpu.memory_space<vmem>>, %arg2: memref<16x16x8xf32, #tpu.memory_space<vmem>>, %arg3: memref<18x25x8xf32, #tpu.memory_space<vmem>>) attributes {dimension_semantics = [#tpu.dimension_semantics<parallel>], iteration_bounds = array<i64: 1>, scalar_prefetch = 0 : i64, scratch_operands = 1 : i64, tpu.core_type = #tpu.core_type<tc>, window_params = [{transform_indices = @transform_0, window_bounds = array<i64: 16, 16, 8>}, {transform_indices = @transform_1, window_bounds = array<i64: 16, 16, 8>}]} {
    %cst = arith.constant 0xFF800000 : f32
    %0 = vector.broadcast %cst : f32 to vector<1x25x8xf32>
    %c0 = arith.constant 0 : index
    %c0_0 = arith.constant 0 : index
    %c0_1 = arith.constant 0 : index
    %1 = vector.load %arg3[%c0, %c0_0, %c0_1] : memref<18x25x8xf32, #tpu.memory_space<vmem>>, vector<1x25x8xf32>
    tpu.vector_store %arg3[%c0, %c0_0, %c0_1], %0 {strides = array<i32>} : memref<18x25x8xf32, #tpu.memory_space<vmem>>, vector<1x25x8xf32>,
    %cst_2 = arith.constant 0xFF800000 : f32
    %2 = vector.broadcast %cst_2 : f32 to vector<1x25x8xf32>
    %c17 = arith.constant 17 : index
    %c0_3 = arith.constant 0 : index
    %c0_4 = arith.constant 0 : index
    %3 = vector.load %arg3[%c17, %c0_3, %c0_4] : memref<18x25x8xf32, #tpu.memory_space<vmem>>, vector<1x25x8xf32>
    tpu.vector_store %arg3[%c17, %c0_3, %c0_4], %2 {strides = array<i32>} : memref<18x25x8xf32, #tpu.memory_space<vmem>>, vector<1x25x8xf32>,
    %cst_5 = arith.constant 0xFF800000 : f32
    %4 = vector.broadcast %cst_5 : f32 to vector<16x8x8xf32>
    %c1 = arith.constant 1 : index
    %c0_6 = arith.constant 0 : index
    %c0_7 = arith.constant 0 : index
    %5 = vector.load %arg3[%c1, %c0_6, %c0_7] : memref<18x25x8xf32, #tpu.memory_space<vmem>>, vector<16x8x8xf32>
    tpu.vector_store %arg3[%c1, %c0_6, %c0_7], %4 {strides = array<i32>} : memref<18x25x8xf32, #tpu.memory_space<vmem>>, vector<16x8x8xf32>,
    %cst_8 = arith.constant 0xFF800000 : f32
    %6 = vector.broadcast %cst_8 : f32 to vector<16x1x8xf32>
    %c1_9 = arith.constant 1 : index
    %c24 = arith.constant 24 : index
    %c0_10 = arith.constant 0 : index
    %7 = vector.load %arg3[%c1_9, %c24, %c0_10] : memref<18x25x8xf32, #tpu.memory_space<vmem>>, vector<16x1x8xf32>
    tpu.vector_store %arg3[%c1_9, %c24, %c0_10], %6 {strides = array<i32>} : memref<18x25x8xf32, #tpu.memory_space<vmem>>, vector<16x1x8xf32>,
    %c0_11 = arith.constant 0 : index
    %c0_12 = arith.constant 0 : index
    %c0_13 = arith.constant 0 : index
    %8 = vector.load %arg1[%c0_11, %c0_12, %c0_13] : memref<16x16x8xf32, #tpu.memory_space<vmem>>, vector<16x16x8xf32>
    %c1_14 = arith.constant 1 : index
    %c8 = arith.constant 8 : index
    %c0_15 = arith.constant 0 : index
    %9 = vector.load %arg3[%c1_14, %c8, %c0_15] : memref<18x25x8xf32, #tpu.memory_space<vmem>>, vector<16x16x8xf32>
    tpu.vector_store %arg3[%c1_14, %c8, %c0_15], %8 {strides = array<i32>} : memref<18x25x8xf32, #tpu.memory_space<vmem>>, vector<16x16x8xf32>,
    %c0_16 = arith.constant 0 : index
    %c7 = arith.constant 7 : index
    %c0_17 = arith.constant 0 : index
    %10 = vector.load %arg3[%c0_16, %c7, %c0_17] : memref<18x25x8xf32, #tpu.memory_space<vmem>>, vector<16x16x8xf32>
    %c0_18 = arith.constant 0 : index
    %c8_19 = arith.constant 8 : index
    %c0_20 = arith.constant 0 : index
    %11 = vector.load %arg3[%c0_18, %c8_19, %c0_20] : memref<18x25x8xf32, #tpu.memory_space<vmem>>, vector<16x16x8xf32>
    %12 = arith.maximumf %10, %11 : vector<16x16x8xf32>
    %c0_21 = arith.constant 0 : index
    %c9 = arith.constant 9 : index
    %c0_22 = arith.constant 0 : index
    %13 = vector.load %arg3[%c0_21, %c9, %c0_22] : memref<18x25x8xf32, #tpu.memory_space<vmem>>, vector<16x16x8xf32>
    %14 = arith.maximumf %12, %13 : vector<16x16x8xf32>
    %c1_23 = arith.constant 1 : index
    %c7_24 = arith.constant 7 : index
    %c0_25 = arith.constant 0 : index
    %15 = vector.load %arg3[%c1_23, %c7_24, %c0_25] : memref<18x25x8xf32, #tpu.memory_space<vmem>>, vector<16x16x8xf32>
    %16 = arith.maximumf %14, %15 : vector<16x16x8xf32>
    %c1_26 = arith.constant 1 : index
    %c8_27 = arith.constant 8 : index
    %c0_28 = arith.constant 0 : index
    %17 = vector.load %arg3[%c1_26, %c8_27, %c0_28] : memref<18x25x8xf32, #tpu.memory_space<vmem>>, vector<16x16x8xf32>
    %18 = arith.maximumf %16, %17 : vector<16x16x8xf32>
    %c1_29 = arith.constant 1 : index
    %c9_30 = arith.constant 9 : index
    %c0_31 = arith.constant 0 : index
    %19 = vector.load %arg3[%c1_29, %c9_30, %c0_31] : memref<18x25x8xf32, #tpu.memory_space<vmem>>, vector<16x16x8xf32>
    %20 = arith.maximumf %18, %19 : vector<16x16x8xf32>
    %c2 = arith.constant 2 : index
    %c7_32 = arith.constant 7 : index
    %c0_33 = arith.constant 0 : index
    %21 = vector.load %arg3[%c2, %c7_32, %c0_33] : memref<18x25x8xf32, #tpu.memory_space<vmem>>, vector<16x16x8xf32>
    %22 = arith.maximumf %20, %21 : vector<16x16x8xf32>
    %c2_34 = arith.constant 2 : index
    %c8_35 = arith.constant 8 : index
    %c0_36 = arith.constant 0 : index
    %23 = vector.load %arg3[%c2_34, %c8_35, %c0_36] : memref<18x25x8xf32, #tpu.memory_space<vmem>>, vector<16x16x8xf32>
    %24 = arith.maximumf %22, %23 : vector<16x16x8xf32>
    %c2_37 = arith.constant 2 : index
    %c9_38 = arith.constant 9 : index
    %c0_39 = arith.constant 0 : index
    %25 = vector.load %arg3[%c2_37, %c9_38, %c0_39] : memref<18x25x8xf32, #tpu.memory_space<vmem>>, vector<16x16x8xf32>
    %26 = arith.maximumf %24, %25 : vector<16x16x8xf32>
    %c0_40 = arith.constant 0 : index
    %c0_41 = arith.constant 0 : index
    %c0_42 = arith.constant 0 : index
    %27 = vector.load %arg2[%c0_40, %c0_41, %c0_42] : memref<16x16x8xf32, #tpu.memory_space<vmem>>, vector<16x16x8xf32>
    tpu.vector_store %arg2[%c0_40, %c0_41, %c0_42], %26 {strides = array<i32>} : memref<16x16x8xf32, #tpu.memory_space<vmem>>, vector<16x16x8xf32>,
    return
  }
  func.func @transform_0(%arg0: i32) -> (i32, i32, i32) {
    %c0_i32 = arith.constant 0 : i32
    %c0_i32_0 = arith.constant 0 : i32
    %c0_i32_1 = arith.constant 0 : i32
    return %c0_i32, %c0_i32_0, %arg0 : i32, i32, i32
  }
  func.func @transform_1(%arg0: i32) -> (i32, i32, i32) {
    %c0_i32 = arith.constant 0 : i32
    %c0_i32_0 = arith.constant 0 : i32
    %c0_i32_1 = arith.constant 0 : i32
    return %c0_i32, %c0_i32_0, %arg0 : i32, i32, i32
  }
}

</mosaic_0001>

<llo_original>
// kernel: pooling_block.1
$region0: #{pooling_block.1}
  #allocation0 [shape = 'u32[]', space=smem, size = 0x4, offset = 0x4, fixed_abs, tag = 'smem constant byte address 0x4 - core index']
  #allocation1 [shape = 'u32[144,128]{1,0:T(1,128)}', space=vmem, size = 0x12000, scoped, tag = 'internal scratch']
  #allocation2 [shape = 'f32[18,25,8]{2,1,0:T(8,128)}', space=vmem, size = 0x48000, scoped, tag = 'scratch operand']
  %s0 = inlined_call_operand.vmem [shape: f32[16,16,8], index: 0, kind: input, shape index: {}]
  %s1 = inlined_call_operand.vmem [shape: f32[16,16,8], index: 1, kind: output, shape index: {}]
  %s2 = sld [smem:[#allocation0]]
  $region14: #{pooling_block.1} parent=0
    _
  %s4 = ssub.s32 1, %s2
  %s5 = scalar_select 0, %s4, %s2
  // Predicated region
  $region2: #{pooling_block.1} parent=0 // pred_check
    _
  $region3: #{pooling_block.1} parent=0 // pred_check_branch
    %7 = sbr.rel (0) target = $region5
  $region4: #{pooling_block.1} parent=0 // pred_region
    _
  $region5: #{pooling_block.1} parent=0 // pred_fallthru
    _
  %vm8 = vcmask 64512
  %9 = vst.msk [vmem:[#allocation2] sm:$0xff] %vm8, -inf
  %10 = vst.msk [vmem:[#allocation2 + $0x8] sm:$0xff] %vm8, -inf
  %11 = vst.msk [vmem:[#allocation2 + $0x10] sm:$0xff] %vm8, -inf
  %vm12 = vcmask 57344
  %13 = vst.msk [vmem:[#allocation2 + $0x18] sm:$0x1] %vm12, -inf
  %s14 = scalar_lea.vmem [#allocation2], 544
  %15 = vst.msk [vmem:[%s14] sm:$0xff] %vm8, -inf
  %16 = vst.msk [vmem:[%s14 + $0x8] sm:$0xff] %vm8, -inf
  %17 = vst.msk [vmem:[%s14 + $0x10] sm:$0xff] %vm8, -inf
  %18 = vst.msk [vmem:[%s14 + $0x18] sm:$0x1] %vm12, -inf
  %s19 = scalar_lea.vmem [#allocation2], 32
  %20 = vst.msk [vmem:[%s19] sm:$0xff] %vm8, -inf
  %21 = vst.msk [vmem:[%s19 + $0x20] sm:$0xff] %vm8, -inf
  %22 = vst.msk [vmem:[%s19 + $0x40] sm:$0xff] %vm8, -inf
  %23 = vst.msk [vmem:[%s19 + $0x60] sm:$0xff] %vm8, -inf
  %24 = vst.msk [vmem:[%s19 + $0x80] sm:$0xff] %vm8, -inf
  %25 = vst.msk [vmem:[%s19 + $0xa0] sm:$0xff] %vm8, -inf
  %26 = vst.msk [vmem:[%s19 + $0xc0] sm:$0xff] %vm8, -inf
  %27 = vst.msk [vmem:[%s19 + $0xe0] sm:$0xff] %vm8, -inf
  %28 = vst.msk [vmem:[%s19 + $0x100] sm:$0xff] %vm8, -inf
  %29 = vst.msk [vmem:[%s19 + $0x120] sm:$0xff] %vm8, -inf
  %30 = vst.msk [vmem:[%s19 + $0x140] sm:$0xff] %vm8, -inf
  %31 = vst.msk [vmem:[%s19 + $0x160] sm:$0xff] %vm8, -inf
  %32 = vst.msk [vmem:[%s19 + $0x180] sm:$0xff] %vm8, -inf
  %33 = vst.msk [vmem:[%s19 + $0x1a0] sm:$0xff] %vm8, -inf
  %34 = vst.msk [vmem:[%s19 + $0x1c0] sm:$0xff] %vm8, -inf
  %35 = vst.msk [vmem:[%s19 + $0x1e0] sm:$0xff] %vm8, -inf
  %36 = vst.msk [vmem:[%s19 + $0x18] sm:$0x1] %vm12, -inf
  %37 = vst.msk [vmem:[%s19 + $0x38] sm:$0x1] %vm12, -inf
  %38 = vst.msk [vmem:[%s19 + $0x58] sm:$0x1] %vm12, -inf
  %39 = vst.msk [vmem:[%s19 + $0x78] sm:$0x1] %vm12, -inf
  %40 = vst.msk [vmem:[%s19 + $0x98] sm:$0x1] %vm12, -inf
  %41 = vst.msk [vmem:[%s19 + $0xb8] sm:$0x1] %vm12, -inf
  %42 = vst.msk [vmem:[%s19 + $0xd8] sm:$0x1] %vm12, -inf
  %43 = vst.msk [vmem:[%s19 + $0xf8] sm:$0x1] %vm12, -inf
  %44 = vst.msk [vmem:[%s19 + $0x118] sm:$0x1] %vm12, -inf
  %45 = vst.msk [vmem:[%s19 + $0x138] sm:$0x1] %vm12, -inf
  %46 = vst.msk [vmem:[%s19 + $0x158] sm:$0x1] %vm12, -inf
  %47 = vst.msk [vmem:[%s19 + $0x178] sm:$0x1] %vm12, -inf
  %48 = vst.msk [vmem:[%s19 + $0x198] sm:$0x1] %vm12, -inf
  %49 = vst.msk [vmem:[%s19 + $0x1b8] sm:$0x1] %vm12, -inf
  %50 = vst.msk [vmem:[%s19 + $0x1d8] sm:$0x1] %vm12, -inf
  %51 = vst.msk [vmem:[%s19 + $0x1f8] sm:$0x1] %vm12, -inf
  %v52 = vld [vmem:[%s0] sm:$0xff]
  %v53 = vld [vmem:[%s0 + $0x8] sm:$0xff]
  %v54 = vld [vmem:[%s0 + $0x10] sm:$0xff]
  %v55 = vld [vmem:[%s0 + $0x18] sm:$0xff]
  %v56 = vld [vmem:[%s0 + $0x20] sm:$0xff]
  %v57 = vld [vmem:[%s0 + $0x28] sm:$0xff]
  %v58 = vld [vmem:[%s0 + $0x30] sm:$0xff]
  %v59 = vld [vmem:[%s0 + $0x38] sm:$0xff]
  %v60 = vld [vmem:[%s0 + $0x40] sm:$0xff]
  %v61 = vld [vmem:[%s0 + $0x48] sm:$0xff]
  %v62 = vld [vmem:[%s0 + $0x50] sm:$0xff]
  %v63 = vld [vmem:[%s0 + $0x58] sm:$0xff]
  %v64 = vld [vmem:[%s0 + $0x60] sm:$0xff]
  %v65 = vld [vmem:[%s0 + $0x68] sm:$0xff]
  %v66 = vld [vmem:[%s0 + $0x70] sm:$0xff]
  %v67 = vld [vmem:[%s0 + $0x78] sm:$0xff]
  %v68 = vld [vmem:[%s0 + $0x80] sm:$0xff]
  %v69 = vld [vmem:[%s0 + $0x88] sm:$0xff]
  %v70 = vld [vmem:[%s0 + $0x90] sm:$0xff]
  %v71 = vld [vmem:[%s0 + $0x98] sm:$0xff]
  %v72 = vld [vmem:[%s0 + $0xa0] sm:$0xff]
  %v73 = vld [vmem:[%s0 + $0xa8] sm:$0xff]
  %v74 = vld [vmem:[%s0 + $0xb0] sm:$0xff]
  %v75 = vld [vmem:[%s0 + $0xb8] sm:$0xff]
  %v76 = vld [vmem:[%s0 + $0xc0] sm:$0xff]
  %v77 = vld [vmem:[%s0 + $0xc8] sm:$0xff]
  %v78 = vld [vmem:[%s0 + $0xd0] sm:$0xff]
  %v79 = vld [vmem:[%s0 + $0xd8] sm:$0xff]
  %v80 = vld [vmem:[%s0 + $0xe0] sm:$0xff]
  %v81 = vld [vmem:[%s0 + $0xe8] sm:$0xff]
  %v82 = vld [vmem:[%s0 + $0xf0] sm:$0xff]
  %v83 = vld [vmem:[%s0 + $0xf8] sm:$0xff]
  %84 = vst.msk [vmem:[%s19 + $0x8] sm:$0xff] %vm8, %v52
  %85 = vst.msk [vmem:[%s19 + $0x10] sm:$0xff] %vm8, %v53
  %86 = vst.msk [vmem:[%s19 + $0x28] sm:$0xff] %vm8, %v54
  %87 = vst.msk [vmem:[%s19 + $0x30] sm:$0xff] %vm8, %v55
  %88 = vst.msk [vmem:[%s19 + $0x48] sm:$0xff] %vm8, %v56
  %89 = vst.msk [vmem:[%s19 + $0x50] sm:$0xff] %vm8, %v57
  %90 = vst.msk [vmem:[%s19 + $0x68] sm:$0xff] %vm8, %v58
  %91 = vst.msk [vmem:[%s19 + $0x70] sm:$0xff] %vm8, %v59
  %92 = vst.msk [vmem:[%s19 + $0x88] sm:$0xff] %vm8, %v60
  %93 = vst.msk [vmem:[%s19 + $0x90] sm:$0xff] %vm8, %v61
  %94 = vst.msk [vmem:[%s19 + $0xa8] sm:$0xff] %vm8, %v62
  %95 = vst.msk [vmem:[%s19 + $0xb0] sm:$0xff] %vm8, %v63
  %96 = vst.msk [vmem:[%s19 + $0xc8] sm:$0xff] %vm8, %v64
  %97 = vst.msk [vmem:[%s19 + $0xd0] sm:$0xff] %vm8, %v65
  %98 = vst.msk [vmem:[%s19 + $0xe8] sm:$0xff] %vm8, %v66
  %99 = vst.msk [vmem:[%s19 + $0xf0] sm:$0xff] %vm8, %v67
  %100 = vst.msk [vmem:[%s19 + $0x108] sm:$0xff] %vm8, %v68
  %101 = vst.msk [vmem:[%s19 + $0x110] sm:$0xff] %vm8, %v69
  %102 = vst.msk [vmem:[%s19 + $0x128] sm:$0xff] %vm8, %v70
  %103 = vst.msk [vmem:[%s19 + $0x130] sm:$0xff] %vm8, %v71
  %104 = vst.msk [vmem:[%s19 + $0x148] sm:$0xff] %vm8, %v72
  %105 = vst.msk [vmem:[%s19 + $0x150] sm:$0xff] %vm8, %v73
  %106 = vst.msk [vmem:[%s19 + $0x168] sm:$0xff] %vm8, %v74
  %107 = vst.msk [vmem:[%s19 + $0x170] sm:$0xff] %vm8, %v75
  %108 = vst.msk [vmem:[%s19 + $0x188] sm:$0xff] %vm8, %v76
  %109 = vst.msk [vmem:[%s19 + $0x190] sm:$0xff] %vm8, %v77
  %110 = vst.msk [vmem:[%s19 + $0x1a8] sm:$0xff] %vm8, %v78
  %111 = vst.msk [vmem:[%s19 + $0x1b0] sm:$0xff] %vm8, %v79
  %112 = vst.msk [vmem:[%s19 + $0x1c8] sm:$0xff] %vm8, %v80
  %113 = vst.msk [vmem:[%s19 + $0x1d0] sm:$0xff] %vm8, %v81
  %114 = vst.msk [vmem:[%s19 + $0x1e8] sm:$0xff] %vm8, %v82
  %115 = vst.msk [vmem:[%s19 + $0x1f0] sm:$0xff] %vm8, %v83
  %v116 = vld [vmem:[#allocation2 + $0x7] sm:$0xff]
  %v117 = vld [vmem:[#allocation2 + $0xf] sm:$0xff]
  %v118 = vld [vmem:[#allocation2 + $0x27] sm:$0xff]
  %v119 = vld [vmem:[#allocation2 + $0x2f] sm:$0xff]
  %v120 = vld [vmem:[#allocation2 + $0x47] sm:$0xff]
  %v121 = vld [vmem:[#allocation2 + $0x4f] sm:$0xff]
  %v122 = vld [vmem:[#allocation2 + $0x67] sm:$0xff]
  %v123 = vld [vmem:[#allocation2 + $0x6f] sm:$0xff]
  %v124 = vld [vmem:[#allocation2 + $0x87] sm:$0xff]
  %v125 = vld [vmem:[#allocation2 + $0x8f] sm:$0xff]
  %v126 = vld [vmem:[#allocation2 + $0xa7] sm:$0xff]
  %v127 = vld [vmem:[#allocation2 + $0xaf] sm:$0xff]
  %v128 = vld [vmem:[#allocation2 + $0xc7] sm:$0xff]
  %v129 = vld [vmem:[#allocation2 + $0xcf] sm:$0xff]
  %v130 = vld [vmem:[#allocation2 + $0xe7] sm:$0xff]
  %v131 = vld [vmem:[#allocation2 + $0xef] sm:$0xff]
  %v132 = vld [vmem:[#allocation2 + $0x107] sm:$0xff]
  %v133 = vld [vmem:[#allocation2 + $0x10f] sm:$0xff]
  %v134 = vld [vmem:[#allocation2 + $0x127] sm:$0xff]
  %v135 = vld [vmem:[#allocation2 + $0x12f] sm:$0xff]
  %v136 = vld [vmem:[#allocation2 + $0x147] sm:$0xff]
  %v137 = vld [vmem:[#allocation2 + $0x14f] sm:$0xff]
  %v138 = vld [vmem:[#allocation2 + $0x167] sm:$0xff]
  %v139 = vld [vmem:[#allocation2 + $0x16f] sm:$0xff]
  %v140 = vld [vmem:[#allocation2 + $0x187] sm:$0xff]
  %v141 = vld [vmem:[#allocation2 + $0x18f] sm:$0xff]
  %v142 = vld [vmem:[#allocation2 + $0x1a7] sm:$0xff]
  %v143 = vld [vmem:[#allocation2 + $0x1af] sm:$0xff]
  %v144 = vld [vmem:[#allocation2 + $0x1c7] sm:$0xff]
  %v145 = vld [vmem:[#allocation2 + $0x1cf] sm:$0xff]
  %v146 = vld [vmem:[#allocation2 + $0x1e7] sm:$0xff]
  %v147 = vld [vmem:[#allocation2 + $0x1ef] sm:$0xff]
  %v148 = vld [vmem:[#allocation2 + $0x8] sm:$0xff]
  %v149 = vld [vmem:[#allocation2 + $0x10] sm:$0xff]
  %v150 = vld [vmem:[#allocation2 + $0x28] sm:$0xff]
  %v151 = vld [vmem:[#allocation2 + $0x30] sm:$0xff]
  %v152 = vld [vmem:[#allocation2 + $0x48] sm:$0xff]
  %v153 = vld [vmem:[#allocation2 + $0x50] sm:$0xff]
  %v154 = vld [vmem:[#allocation2 + $0x68] sm:$0xff]
  %v155 = vld [vmem:[#allocation2 + $0x70] sm:$0xff]
  %v156 = vld [vmem:[#allocation2 + $0x88] sm:$0xff]
  %v157 = vld [vmem:[#allocation2 + $0x90] sm:$0xff]
  %v158 = vld [vmem:[#allocation2 + $0xa8] sm:$0xff]
  %v159 = vld [vmem:[#allocation2 + $0xb0] sm:$0xff]
  %v160 = vld [vmem:[#allocation2 + $0xc8] sm:$0xff]
  %v161 = vld [vmem:[#allocation2 + $0xd0] sm:$0xff]
  %v162 = vld [vmem:[#allocation2 + $0xe8] sm:$0xff]
  %v163 = vld [vmem:[#allocation2 + $0xf0] sm:$0xff]
  %v164 = vld [vmem:[#allocation2 + $0x108] sm:$0xff]
  %v165 = vld [vmem:[#allocation2 + $0x110] sm:$0xff]
  %v166 = vld [vmem:[#allocation2 + $0x128] sm:$0xff]
  %v167 = vld [vmem:[#allocation2 + $0x130] sm:$0xff]
  %v168 = vld [vmem:[#allocation2 + $0x148] sm:$0xff]
  %v169 = vld [vmem:[#allocation2 + $0x150] sm:$0xff]
  %v170 = vld [vmem:[#allocation2 + $0x168] sm:$0xff]
  %v171 = vld [vmem:[#allocation2 + $0x170] sm:$0xff]
  %v172 = vld [vmem:[#allocation2 + $0x188] sm:$0xff]
  %v173 = vld [vmem:[#allocation2 + $0x190] sm:$0xff]
  %v174 = vld [vmem:[#allocation2 + $0x1a8] sm:$0xff]
  %v175 = vld [vmem:[#allocation2 + $0x1b0] sm:$0xff]
  %v176 = vld [vmem:[#allocation2 + $0x1c8] sm:$0xff]
  %v177 = vld [vmem:[#allocation2 + $0x1d0] sm:$0xff]
  %v178 = vld [vmem:[#allocation2 + $0x1e8] sm:$0xff]
  %v179 = vld [vmem:[#allocation2 + $0x1f0] sm:$0xff]
  %v180 = vmax.f32 %v116, %v148
  %v181 = vmax.f32 %v117, %v149
  %v182 = vmax.f32 %v118, %v150
  %v183 = vmax.f32 %v119, %v151
  %v184 = vmax.f32 %v120, %v152
  %v185 = vmax.f32 %v121, %v153
  %v186 = vmax.f32 %v122, %v154
  %v187 = vmax.f32 %v123, %v155
  %v188 = vmax.f32 %v124, %v156
  %v189 = vmax.f32 %v125, %v157
  %v190 = vmax.f32 %v126, %v158
  %v191 = vmax.f32 %v127, %v159
  %v192 = vmax.f32 %v128, %v160
  %v193 = vmax.f32 %v129, %v161
  %v194 = vmax.f32 %v130, %v162
  %v195 = vmax.f32 %v131, %v163
  %v196 = vmax.f32 %v132, %v164
  %v197 = vmax.f32 %v133, %v165
  %v198 = vmax.f32 %v134, %v166
  %v199 = vmax.f32 %v135, %v167
  %v200 = vmax.f32 %v136, %v168
  %v201 = vmax.f32 %v137, %v169
  %v202 = vmax.f32 %v138, %v170
  %v203 = vmax.f32 %v139, %v171
  %v204 = vmax.f32 %v140, %v172
  %v205 = vmax.f32 %v141, %v173
  %v206 = vmax.f32 %v142, %v174
  %v207 = vmax.f32 %v143, %v175
  %v208 = vmax.f32 %v144, %v176
  %v209 = vmax.f32 %v145, %v177
  %v210 = vmax.f32 %v146, %v178
  %v211 = vmax.f32 %v147, %v179
  %v212 = vld [vmem:[#allocation2 + $0x9] sm:$0xff]
  %v213 = vld [vmem:[#allocation2 + $0x11] sm:$0xff]
  %v214 = vld [vmem:[#allocation2 + $0x29] sm:$0xff]
  %v215 = vld [vmem:[#allocation2 + $0x31] sm:$0xff]
  %v216 = vld [vmem:[#allocation2 + $0x49] sm:$0xff]
  %v217 = vld [vmem:[#allocation2 + $0x51] sm:$0xff]
  %v218 = vld [vmem:[#allocation2 + $0x69] sm:$0xff]
  %v219 = vld [vmem:[#allocation2 + $0x71] sm:$0xff]
  %v220 = vld [vmem:[#allocation2 + $0x89] sm:$0xff]
  %v221 = vld [vmem:[#allocation2 + $0x91] sm:$0xff]
  %v222 = vld [vmem:[#allocation2 + $0xa9] sm:$0xff]
  %v223 = vld [vmem:[#allocation2 + $0xb1] sm:$0xff]
  %v224 = vld [vmem:[#allocation2 + $0xc9] sm:$0xff]
  %v225 = vld [vmem:[#allocation2 + $0xd1] sm:$0xff]
  %v226 = vld [vmem:[#allocation2 + $0xe9] sm:$0xff]
  %v227 = vld [vmem:[#allocation2 + $0xf1] sm:$0xff]
  %v228 = vld [vmem:[#allocation2 + $0x109] sm:$0xff]
  %v229 = vld [vmem:[#allocation2 + $0x111] sm:$0xff]
  %v230 = vld [vmem:[#allocation2 + $0x129] sm:$0xff]
  %v231 = vld [vmem:[#allocation2 + $0x131] sm:$0xff]
  %v232 = vld [vmem:[#allocation2 + $0x149] sm:$0xff]
  %v233 = vld [vmem:[#allocation2 + $0x151] sm:$0xff]
  %v234 = vld [vmem:[#allocation2 + $0x169] sm:$0xff]
  %v235 = vld [vmem:[#allocation2 + $0x171] sm:$0xff]
  %v236 = vld [vmem:[#allocation2 + $0x189] sm:$0xff]
  %v237 = vld [vmem:[#allocation2 + $0x191] sm:$0xff]
  %v238 = vld [vmem:[#allocation2 + $0x1a9] sm:$0xff]
  %v239 = vld [vmem:[#allocation2 + $0x1b1] sm:$0xff]
  %v240 = vld [vmem:[#allocation2 + $0x1c9] sm:$0xff]
  %v241 = vld [vmem:[#allocation2 + $0x1d1] sm:$0xff]
  %v242 = vld [vmem:[#allocation2 + $0x1e9] sm:$0xff]
  %v243 = vld [vmem:[#allocation2 + $0x1f1] sm:$0xff]
  %v244 = vmax.f32 %v180, %v212
  %v245 = vmax.f32 %v181, %v213
  %v246 = vmax.f32 %v182, %v214
  %v247 = vmax.f32 %v183, %v215
  %v248 = vmax.f32 %v184, %v216
  %v249 = vmax.f32 %v185, %v217
  %v250 = vmax.f32 %v186, %v218
  %v251 = vmax.f32 %v187, %v219
  %v252 = vmax.f32 %v188, %v220
  %v253 = vmax.f32 %v189, %v221
  %v254 = vmax.f32 %v190, %v222
  %v255 = vmax.f32 %v191, %v223
  %v256 = vmax.f32 %v192, %v224
  %v257 = vmax.f32 %v193, %v225
  %v258 = vmax.f32 %v194, %v226
  %v259 = vmax.f32 %v195, %v227
  %v260 = vmax.f32 %v196, %v228
  %v261 = vmax.f32 %v197, %v229
  %v262 = vmax.f32 %v198, %v230
  %v263 = vmax.f32 %v199, %v231
  %v264 = vmax.f32 %v200, %v232
  %v265 = vmax.f32 %v201, %v233
  %v266 = vmax.f32 %v202, %v234
  %v267 = vmax.f32 %v203, %v235
  %v268 = vmax.f32 %v204, %v236
  %v269 = vmax.f32 %v205, %v237
  %v270 = vmax.f32 %v206, %v238
  %v271 = vmax.f32 %v207, %v239
  %v272 = vmax.f32 %v208, %v240
  %v273 = vmax.f32 %v209, %v241
  %v274 = vmax.f32 %v210, %v242
  %v275 = vmax.f32 %v211, %v243
  %v276 = vld [vmem:[%s19 + $0x7] sm:$0xff]
  %v277 = vld [vmem:[%s19 + $0xf] sm:$0xff]
  %v278 = vld [vmem:[%s19 + $0x27] sm:$0xff]
  %v279 = vld [vmem:[%s19 + $0x2f] sm:$0xff]
  %v280 = vld [vmem:[%s19 + $0x47] sm:$0xff]
  %v281 = vld [vmem:[%s19 + $0x4f] sm:$0xff]
  %v282 = vld [vmem:[%s19 + $0x67] sm:$0xff]
  %v283 = vld [vmem:[%s19 + $0x6f] sm:$0xff]
  %v284 = vld [vmem:[%s19 + $0x87] sm:$0xff]
  %v285 = vld [vmem:[%s19 + $0x8f] sm:$0xff]
  %v286 = vld [vmem:[%s19 + $0xa7] sm:$0xff]
  %v287 = vld [vmem:[%s19 + $0xaf] sm:$0xff]
  %v288 = vld [vmem:[%s19 + $0xc7] sm:$0xff]
  %v289 = vld [vmem:[%s19 + $0xcf] sm:$0xff]
  %v290 = vld [vmem:[%s19 + $0xe7] sm:$0xff]
  %v291 = vld [vmem:[%s19 + $0xef] sm:$0xff]
  %v292 = vld [vmem:[%s19 + $0x107] sm:$0xff]
  %v293 = vld [vmem:[%s19 + $0x10f] sm:$0xff]
  %v294 = vld [vmem:[%s19 + $0x127] sm:$0xff]
  %v295 = vld [vmem:[%s19 + $0x12f] sm:$0xff]
  %v296 = vld [vmem:[%s19 + $0x147] sm:$0xff]
  %v297 = vld [vmem:[%s19 + $0x14f] sm:$0xff]
  %v298 = vld [vmem:[%s19 + $0x167] sm:$0xff]
  %v299 = vld [vmem:[%s19 + $0x16f] sm:$0xff]
  %v300 = vld [vmem:[%s19 + $0x187] sm:$0xff]
  %v301 = vld [vmem:[%s19 + $0x18f] sm:$0xff]
  %v302 = vld [vmem:[%s19 + $0x1a7] sm:$0xff]
  %v303 = vld [vmem:[%s19 + $0x1af] sm:$0xff]
  %v304 = vld [vmem:[%s19 + $0x1c7] sm:$0xff]
  %v305 = vld [vmem:[%s19 + $0x1cf] sm:$0xff]
  %v306 = vld [vmem:[%s19 + $0x1e7] sm:$0xff]
  %v307 = vld [vmem:[%s19 + $0x1ef] sm:$0xff]
  %v308 = vmax.f32 %v244, %v276
  %v309 = vmax.f32 %v245, %v277
  %v310 = vmax.f32 %v246, %v278
  %v311 = vmax.f32 %v247, %v279
  %v312 = vmax.f32 %v248, %v280
  %v313 = vmax.f32 %v249, %v281
  %v314 = vmax.f32 %v250, %v282
  %v315 = vmax.f32 %v251, %v283
  %v316 = vmax.f32 %v252, %v284
  %v317 = vmax.f32 %v253, %v285
  %v318 = vmax.f32 %v254, %v286
  %v319 = vmax.f32 %v255, %v287
  %v320 = vmax.f32 %v256, %v288
  %v321 = vmax.f32 %v257, %v289
  %v322 = vmax.f32 %v258, %v290
  %v323 = vmax.f32 %v259, %v291
  %v324 = vmax.f32 %v260, %v292
  %v325 = vmax.f32 %v261, %v293
  %v326 = vmax.f32 %v262, %v294
  %v327 = vmax.f32 %v263, %v295
  %v328 = vmax.f32 %v264, %v296
  %v329 = vmax.f32 %v265, %v297
  %v330 = vmax.f32 %v266, %v298
  %v331 = vmax.f32 %v267, %v299
  %v332 = vmax.f32 %v268, %v300
  %v333 = vmax.f32 %v269, %v301
  %v334 = vmax.f32 %v270, %v302
  %v335 = vmax.f32 %v271, %v303
  %v336 = vmax.f32 %v272, %v304
  %v337 = vmax.f32 %v273, %v305
  %v338 = vmax.f32 %v274, %v306
  %v339 = vmax.f32 %v275, %v307
  %v340 = vld [vmem:[%s19 + $0x8] sm:$0xff]
  %v341 = vld [vmem:[%s19 + $0x10] sm:$0xff]
  %v342 = vld [vmem:[%s19 + $0x28] sm:$0xff]
  %v343 = vld [vmem:[%s19 + $0x30] sm:$0xff]
  %v344 = vld [vmem:[%s19 + $0x48] sm:$0xff]
  %v345 = vld [vmem:[%s19 + $0x50] sm:$0xff]
  %v346 = vld [vmem:[%s19 + $0x68] sm:$0xff]
  %v347 = vld [vmem:[%s19 + $0x70] sm:$0xff]
  %v348 = vld [vmem:[%s19 + $0x88] sm:$0xff]
  %v349 = vld [vmem:[%s19 + $0x90] sm:$0xff]
  %v350 = vld [vmem:[%s19 + $0xa8] sm:$0xff]
  %v351 = vld [vmem:[%s19 + $0xb0] sm:$0xff]
  %v352 = vld [vmem:[%s19 + $0xc8] sm:$0xff]
  %v353 = vld [vmem:[%s19 + $0xd0] sm:$0xff]
  %v354 = vld [vmem:[%s19 + $0xe8] sm:$0xff]
  %v355 = vld [vmem:[%s19 + $0xf0] sm:$0xff]
  %v356 = vld [vmem:[%s19 + $0x108] sm:$0xff]
  %v357 = vld [vmem:[%s19 + $0x110] sm:$0xff]
  %v358 = vld [vmem:[%s19 + $0x128] sm:$0xff]
  %v359 = vld [vmem:[%s19 + $0x130] sm:$0xff]
  %v360 = vld [vmem:[%s19 + $0x148] sm:$0xff]
  %v361 = vld [vmem:[%s19 + $0x150] sm:$0xff]
  %v362 = vld [vmem:[%s19 + $0x168] sm:$0xff]
  %v363 = vld [vmem:[%s19 + $0x170] sm:$0xff]
  %v364 = vld [vmem:[%s19 + $0x188] sm:$0xff]
  %v365 = vld [vmem:[%s19 + $0x190] sm:$0xff]
  %v366 = vld [vmem:[%s19 + $0x1a8] sm:$0xff]
  %v367 = vld [vmem:[%s19 + $0x1b0] sm:$0xff]
  %v368 = vld [vmem:[%s19 + $0x1c8] sm:$0xff]
  %v369 = vld [vmem:[%s19 + $0x1d0] sm:$0xff]
  %v370 = vld [vmem:[%s19 + $0x1e8] sm:$0xff]
  %v371 = vld [vmem:[%s19 + $0x1f0] sm:$0xff]
  %v372 = vmax.f32 %v308, %v340
  %v373 = vmax.f32 %v309, %v341
  %v374 = vmax.f32 %v310, %v342
  %v375 = vmax.f32 %v311, %v343
  %v376 = vmax.f32 %v312, %v344
  %v377 = vmax.f32 %v313, %v345
  %v378 = vmax.f32 %v314, %v346
  %v379 = vmax.f32 %v315, %v347
  %v380 = vmax.f32 %v316, %v348
  %v381 = vmax.f32 %v317, %v349
  %v382 = vmax.f32 %v318, %v350
  %v383 = vmax.f32 %v319, %v351
  %v384 = vmax.f32 %v320, %v352
  %v385 = vmax.f32 %v321, %v353
  %v386 = vmax.f32 %v322, %v354
  %v387 = vmax.f32 %v323, %v355
  %v388 = vmax.f32 %v324, %v356
  %v389 = vmax.f32 %v325, %v357
  %v390 = vmax.f32 %v326, %v358
  %v391 = vmax.f32 %v327, %v359
  %v392 = vmax.f32 %v328, %v360
  %v393 = vmax.f32 %v329, %v361
  %v394 = vmax.f32 %v330, %v362
  %v395 = vmax.f32 %v331, %v363
  %v396 = vmax.f32 %v332, %v364
  %v397 = vmax.f32 %v333, %v365
  %v398 = vmax.f32 %v334, %v366
  %v399 = vmax.f32 %v335, %v367
  %v400 = vmax.f32 %v336, %v368
  %v401 = vmax.f32 %v337, %v369
  %v402 = vmax.f32 %v338, %v370
  %v403 = vmax.f32 %v339, %v371
  %v404 = vld [vmem:[%s19 + $0x9] sm:$0xff]
  %v405 = vld [vmem:[%s19 + $0x11] sm:$0xff]
  %v406 = vld [vmem:[%s19 + $0x29] sm:$0xff]
  %v407 = vld [vmem:[%s19 + $0x31] sm:$0xff]
  %v408 = vld [vmem:[%s19 + $0x49] sm:$0xff]
  %v409 = vld [vmem:[%s19 + $0x51] sm:$0xff]
  %v410 = vld [vmem:[%s19 + $0x69] sm:$0xff]
  %v411 = vld [vmem:[%s19 + $0x71] sm:$0xff]
  %v412 = vld [vmem:[%s19 + $0x89] sm:$0xff]
  %v413 = vld [vmem:[%s19 + $0x91] sm:$0xff]
  %v414 = vld [vmem:[%s19 + $0xa9] sm:$0xff]
  %v415 = vld [vmem:[%s19 + $0xb1] sm:$0xff]
  %v416 = vld [vmem:[%s19 + $0xc9] sm:$0xff]
  %v417 = vld [vmem:[%s19 + $0xd1] sm:$0xff]
  %v418 = vld [vmem:[%s19 + $0xe9] sm:$0xff]
  %v419 = vld [vmem:[%s19 + $0xf1] sm:$0xff]
  %v420 = vld [vmem:[%s19 + $0x109] sm:$0xff]
  %v421 = vld [vmem:[%s19 + $0x111] sm:$0xff]
  %v422 = vld [vmem:[%s19 + $0x129] sm:$0xff]
  %v423 = vld [vmem:[%s19 + $0x131] sm:$0xff]
  %v424 = vld [vmem:[%s19 + $0x149] sm:$0xff]
  %v425 = vld [vmem:[%s19 + $0x151] sm:$0xff]
  %v426 = vld [vmem:[%s19 + $0x169] sm:$0xff]
  %v427 = vld [vmem:[%s19 + $0x171] sm:$0xff]
  %v428 = vld [vmem:[%s19 + $0x189] sm:$0xff]
  %v429 = vld [vmem:[%s19 + $0x191] sm:$0xff]
  %v430 = vld [vmem:[%s19 + $0x1a9] sm:$0xff]
  %v431 = vld [vmem:[%s19 + $0x1b1] sm:$0xff]
  %v432 = vld [vmem:[%s19 + $0x1c9] sm:$0xff]
  %v433 = vld [vmem:[%s19 + $0x1d1] sm:$0xff]
  %v434 = vld [vmem:[%s19 + $0x1e9] sm:$0xff]
  %v435 = vld [vmem:[%s19 + $0x1f1] sm:$0xff]
  %v436 = vmax.f32 %v372, %v404
  %v437 = vmax.f32 %v373, %v405
  %v438 = vmax.f32 %v374, %v406
  %v439 = vmax.f32 %v375, %v407
  %v440 = vmax.f32 %v376, %v408
  %v441 = vmax.f32 %v377, %v409
  %v442 = vmax.f32 %v378, %v410
  %v443 = vmax.f32 %v379, %v411
  %v444 = vmax.f32 %v380, %v412
  %v445 = vmax.f32 %v381, %v413
  %v446 = vmax.f32 %v382, %v414
  %v447 = vmax.f32 %v383, %v415
  %v448 = vmax.f32 %v384, %v416
  %v449 = vmax.f32 %v385, %v417
  %v450 = vmax.f32 %v386, %v418
  %v451 = vmax.f32 %v387, %v419
  %v452 = vmax.f32 %v388, %v420
  %v453 = vmax.f32 %v389, %v421
  %v454 = vmax.f32 %v390, %v422
  %v455 = vmax.f32 %v391, %v423
  %v456 = vmax.f32 %v392, %v424
  %v457 = vmax.f32 %v393, %v425
  %v458 = vmax.f32 %v394, %v426
  %v459 = vmax.f32 %v395, %v427
  %v460 = vmax.f32 %v396, %v428
  %v461 = vmax.f32 %v397, %v429
  %v462 = vmax.f32 %v398, %v430
  %v463 = vmax.f32 %v399, %v431
  %v464 = vmax.f32 %v400, %v432
  %v465 = vmax.f32 %v401, %v433
  %v466 = vmax.f32 %v402, %v434
  %v467 = vmax.f32 %v403, %v435
  %s468 = scalar_lea.vmem [#allocation2], 64
  %v469 = vld [vmem:[%s468 + $0x7] sm:$0xff]
  %v470 = vld [vmem:[%s468 + $0xf] sm:$0xff]
  %v471 = vld [vmem:[%s468 + $0x27] sm:$0xff]
  %v472 = vld [vmem:[%s468 + $0x2f] sm:$0xff]
  %v473 = vld [vmem:[%s468 + $0x47] sm:$0xff]
  %v474 = vld [vmem:[%s468 + $0x4f] sm:$0xff]
  %v475 = vld [vmem:[%s468 + $0x67] sm:$0xff]
  %v476 = vld [vmem:[%s468 + $0x6f] sm:$0xff]
  %v477 = vld [vmem:[%s468 + $0x87] sm:$0xff]
  %v478 = vld [vmem:[%s468 + $0x8f] sm:$0xff]
  %v479 = vld [vmem:[%s468 + $0xa7] sm:$0xff]
  %v480 = vld [vmem:[%s468 + $0xaf] sm:$0xff]
  %v481 = vld [vmem:[%s468 + $0xc7] sm:$0xff]
  %v482 = vld [vmem:[%s468 + $0xcf] sm:$0xff]
  %v483 = vld [vmem:[%s468 + $0xe7] sm:$0xff]
  %v484 = vld [vmem:[%s468 + $0xef] sm:$0xff]
  %v485 = vld [vmem:[%s468 + $0x107] sm:$0xff]
  %v486 = vld [vmem:[%s468 + $0x10f] sm:$0xff]
  %v487 = vld [vmem:[%s468 + $0x127] sm:$0xff]
  %v488 = vld [vmem:[%s468 + $0x12f] sm:$0xff]
  %v489 = vld [vmem:[%s468 + $0x147] sm:$0xff]
  %v490 = vld [vmem:[%s468 + $0x14f] sm:$0xff]
  %v491 = vld [vmem:[%s468 + $0x167] sm:$0xff]
  %v492 = vld [vmem:[%s468 + $0x16f] sm:$0xff]
  %v493 = vld [vmem:[%s468 + $0x187] sm:$0xff]
  %v494 = vld [vmem:[%s468 + $0x18f] sm:$0xff]
  %v495 = vld [vmem:[%s468 + $0x1a7] sm:$0xff]
  %v496 = vld [vmem:[%s468 + $0x1af] sm:$0xff]
  %v497 = vld [vmem:[%s468 + $0x1c7] sm:$0xff]
  %v498 = vld [vmem:[%s468 + $0x1cf] sm:$0xff]
  %v499 = vld [vmem:[%s468 + $0x1e7] sm:$0xff]
  %v500 = vld [vmem:[%s468 + $0x1ef] sm:$0xff]
  %v501 = vmax.f32 %v436, %v469
  %v502 = vmax.f32 %v437, %v470
  %v503 = vmax.f32 %v438, %v471
  %v504 = vmax.f32 %v439, %v472
  %v505 = vmax.f32 %v440, %v473
  %v506 = vmax.f32 %v441, %v474
  %v507 = vmax.f32 %v442, %v475
  %v508 = vmax.f32 %v443, %v476
  %v509 = vmax.f32 %v444, %v477
  %v510 = vmax.f32 %v445, %v478
  %v511 = vmax.f32 %v446, %v479
  %v512 = vmax.f32 %v447, %v480
  %v513 = vmax.f32 %v448, %v481
  %v514 = vmax.f32 %v449, %v482
  %v515 = vmax.f32 %v450, %v483
  %v516 = vmax.f32 %v451, %v484
  %v517 = vmax.f32 %v452, %v485
  %v518 = vmax.f32 %v453, %v486
  %v519 = vmax.f32 %v454, %v487
  %v520 = vmax.f32 %v455, %v488
  %v521 = vmax.f32 %v456, %v489
  %v522 = vmax.f32 %v457, %v490
  %v523 = vmax.f32 %v458, %v491
  %v524 = vmax.f32 %v459, %v492
  %v525 = vmax.f32 %v460, %v493
  %v526 = vmax.f32 %v461, %v494
  %v527 = vmax.f32 %v462, %v495
  %v528 = vmax.f32 %v463, %v496
  %v529 = vmax.f32 %v464, %v497
  %v530 = vmax.f32 %v465, %v498
  %v531 = vmax.f32 %v466, %v499
  %v532 = vmax.f32 %v467, %v500
  %v533 = vld [vmem:[%s468 + $0x8] sm:$0xff]
  %v534 = vld [vmem:[%s468 + $0x10] sm:$0xff]
  %v535 = vld [vmem:[%s468 + $0x28] sm:$0xff]
  %v536 = vld [vmem:[%s468 + $0x30] sm:$0xff]
  %v537 = vld [vmem:[%s468 + $0x48] sm:$0xff]
  %v538 = vld [vmem:[%s468 + $0x50] sm:$0xff]
  %v539 = vld [vmem:[%s468 + $0x68] sm:$0xff]
  %v540 = vld [vmem:[%s468 + $0x70] sm:$0xff]
  %v541 = vld [vmem:[%s468 + $0x88] sm:$0xff]
  %v542 = vld [vmem:[%s468 + $0x90] sm:$0xff]
  %v543 = vld [vmem:[%s468 + $0xa8] sm:$0xff]
  %v544 = vld [vmem:[%s468 + $0xb0] sm:$0xff]
  %v545 = vld [vmem:[%s468 + $0xc8] sm:$0xff]
  %v546 = vld [vmem:[%s468 + $0xd0] sm:$0xff]
  %v547 = vld [vmem:[%s468 + $0xe8] sm:$0xff]
  %v548 = vld [vmem:[%s468 + $0xf0] sm:$0xff]
  %v549 = vld [vmem:[%s468 + $0x108] sm:$0xff]
  %v550 = vld [vmem:[%s468 + $0x110] sm:$0xff]
  %v551 = vld [vmem:[%s468 + $0x128] sm:$0xff]
  %v552 = vld [vmem:[%s468 + $0x130] sm:$0xff]
  %v553 = vld [vmem:[%s468 + $0x148] sm:$0xff]
  %v554 = vld [vmem:[%s468 + $0x150] sm:$0xff]
  %v555 = vld [vmem:[%s468 + $0x168] sm:$0xff]
  %v556 = vld [vmem:[%s468 + $0x170] sm:$0xff]
  %v557 = vld [vmem:[%s468 + $0x188] sm:$0xff]
  %v558 = vld [vmem:[%s468 + $0x190] sm:$0xff]
  %v559 = vld [vmem:[%s468 + $0x1a8] sm:$0xff]
  %v560 = vld [vmem:[%s468 + $0x1b0] sm:$0xff]
  %v561 = vld [vmem:[%s468 + $0x1c8] sm:$0xff]
  %v562 = vld [vmem:[%s468 + $0x1d0] sm:$0xff]
  %v563 = vld [vmem:[%s468 + $0x1e8] sm:$0xff]
  %v564 = vld [vmem:[%s468 + $0x1f0] sm:$0xff]
  %v565 = vmax.f32 %v501, %v533
  %v566 = vmax.f32 %v502, %v534
  %v567 = vmax.f32 %v503, %v535
  %v568 = vmax.f32 %v504, %v536
  %v569 = vmax.f32 %v505, %v537
  %v570 = vmax.f32 %v506, %v538
  %v571 = vmax.f32 %v507, %v539
  %v572 = vmax.f32 %v508, %v540
  %v573 = vmax.f32 %v509, %v541
  %v574 = vmax.f32 %v510, %v542
  %v575 = vmax.f32 %v511, %v543
  %v576 = vmax.f32 %v512, %v544
  %v577 = vmax.f32 %v513, %v545
  %v578 = vmax.f32 %v514, %v546
  %v579 = vmax.f32 %v515, %v547
  %v580 = vmax.f32 %v516, %v548
  %v581 = vmax.f32 %v517, %v549
  %v582 = vmax.f32 %v518, %v550
  %v583 = vmax.f32 %v519, %v551
  %v584 = vmax.f32 %v520, %v552
  %v585 = vmax.f32 %v521, %v553
  %v586 = vmax.f32 %v522, %v554
  %v587 = vmax.f32 %v523, %v555
  %v588 = vmax.f32 %v524, %v556
  %v589 = vmax.f32 %v525, %v557
  %v590 = vmax.f32 %v526, %v558
  %v591 = vmax.f32 %v527, %v559
  %v592 = vmax.f32 %v528, %v560
  %v593 = vmax.f32 %v529, %v561
  %v594 = vmax.f32 %v530, %v562
  %v595 = vmax.f32 %v531, %v563
  %v596 = vmax.f32 %v532, %v564
  %v597 = vld [vmem:[%s468 + $0x9] sm:$0xff]
  %v598 = vld [vmem:[%s468 + $0x11] sm:$0xff]
  %v599 = vld [vmem:[%s468 + $0x29] sm:$0xff]
  %v600 = vld [vmem:[%s468 + $0x31] sm:$0xff]
  %v601 = vld [vmem:[%s468 + $0x49] sm:$0xff]
  %v602 = vld [vmem:[%s468 + $0x51] sm:$0xff]
  %v603 = vld [vmem:[%s468 + $0x69] sm:$0xff]
  %v604 = vld [vmem:[%s468 + $0x71] sm:$0xff]
  %v605 = vld [vmem:[%s468 + $0x89] sm:$0xff]
  %v606 = vld [vmem:[%s468 + $0x91] sm:$0xff]
  %v607 = vld [vmem:[%s468 + $0xa9] sm:$0xff]
  %v608 = vld [vmem:[%s468 + $0xb1] sm:$0xff]
  %v609 = vld [vmem:[%s468 + $0xc9] sm:$0xff]
  %v610 = vld [vmem:[%s468 + $0xd1] sm:$0xff]
  %v611 = vld [vmem:[%s468 + $0xe9] sm:$0xff]
  %v612 = vld [vmem:[%s468 + $0xf1] sm:$0xff]
  %v613 = vld [vmem:[%s468 + $0x109] sm:$0xff]
  %v614 = vld [vmem:[%s468 + $0x111] sm:$0xff]
  %v615 = vld [vmem:[%s468 + $0x129] sm:$0xff]
  %v616 = vld [vmem:[%s468 + $0x131] sm:$0xff]
  %v617 = vld [vmem:[%s468 + $0x149] sm:$0xff]
  %v618 = vld [vmem:[%s468 + $0x151] sm:$0xff]
  %v619 = vld [vmem:[%s468 + $0x169] sm:$0xff]
  %v620 = vld [vmem:[%s468 + $0x171] sm:$0xff]
  %v621 = vld [vmem:[%s468 + $0x189] sm:$0xff]
  %v622 = vld [vmem:[%s468 + $0x191] sm:$0xff]
  %v623 = vld [vmem:[%s468 + $0x1a9] sm:$0xff]
  %v624 = vld [vmem:[%s468 + $0x1b1] sm:$0xff]
  %v625 = vld [vmem:[%s468 + $0x1c9] sm:$0xff]
  %v626 = vld [vmem:[%s468 + $0x1d1] sm:$0xff]
  %v627 = vld [vmem:[%s468 + $0x1e9] sm:$0xff]
  %v628 = vld [vmem:[%s468 + $0x1f1] sm:$0xff]
  %v629 = vmax.f32 %v565, %v597
  %v630 = vmax.f32 %v566, %v598
  %v631 = vmax.f32 %v567, %v599
  %v632 = vmax.f32 %v568, %v600
  %v633 = vmax.f32 %v569, %v601
  %v634 = vmax.f32 %v570, %v602
  %v635 = vmax.f32 %v571, %v603
  %v636 = vmax.f32 %v572, %v604
  %v637 = vmax.f32 %v573, %v605
  %v638 = vmax.f32 %v574, %v606
  %v639 = vmax.f32 %v575, %v607
  %v640 = vmax.f32 %v576, %v608
  %v641 = vmax.f32 %v577, %v609
  %v642 = vmax.f32 %v578, %v610
  %v643 = vmax.f32 %v579, %v611
  %v644 = vmax.f32 %v580, %v612
  %v645 = vmax.f32 %v581, %v613
  %v646 = vmax.f32 %v582, %v614
  %v647 = vmax.f32 %v583, %v615
  %v648 = vmax.f32 %v584, %v616
  %v649 = vmax.f32 %v585, %v617
  %v650 = vmax.f32 %v586, %v618
  %v651 = vmax.f32 %v587, %v619
  %v652 = vmax.f32 %v588, %v620
  %v653 = vmax.f32 %v589, %v621
  %v654 = vmax.f32 %v590, %v622
  %v655 = vmax.f32 %v591, %v623
  %v656 = vmax.f32 %v592, %v624
  %v657 = vmax.f32 %v593, %v625
  %v658 = vmax.f32 %v594, %v626
  %v659 = vmax.f32 %v595, %v627
  %v660 = vmax.f32 %v596, %v628
  %661 = vst.msk [vmem:[%s1] sm:$0xff] %vm8, %v629
  %662 = vst.msk [vmem:[%s1 + $0x8] sm:$0xff] %vm8, %v630
  %663 = vst.msk [vmem:[%s1 + $0x10] sm:$0xff] %vm8, %v631
  %664 = vst.msk [vmem:[%s1 + $0x18] sm:$0xff] %vm8, %v632
  %665 = vst.msk [vmem:[%s1 + $0x20] sm:$0xff] %vm8, %v633
  %666 = vst.msk [vmem:[%s1 + $0x28] sm:$0xff] %vm8, %v634
  %667 = vst.msk [vmem:[%s1 + $0x30] sm:$0xff] %vm8, %v635
  %668 = vst.msk [vmem:[%s1 + $0x38] sm:$0xff] %vm8, %v636
  %669 = vst.msk [vmem:[%s1 + $0x40] sm:$0xff] %vm8, %v637
  %670 = vst.msk [vmem:[%s1 + $0x48] sm:$0xff] %vm8, %v638
  %671 = vst.msk [vmem:[%s1 + $0x50] sm:$0xff] %vm8, %v639
  %672 = vst.msk [vmem:[%s1 + $0x58] sm:$0xff] %vm8, %v640
  %673 = vst.msk [vmem:[%s1 + $0x60] sm:$0xff] %vm8, %v641
  %674 = vst.msk [vmem:[%s1 + $0x68] sm:$0xff] %vm8, %v642
  %675 = vst.msk [vmem:[%s1 + $0x70] sm:$0xff] %vm8, %v643
  %676 = vst.msk [vmem:[%s1 + $0x78] sm:$0xff] %vm8, %v644
  %677 = vst.msk [vmem:[%s1 + $0x80] sm:$0xff] %vm8, %v645
  %678 = vst.msk [vmem:[%s1 + $0x88] sm:$0xff] %vm8, %v646
  %679 = vst.msk [vmem:[%s1 + $0x90] sm:$0xff] %vm8, %v647
  %680 = vst.msk [vmem:[%s1 + $0x98] sm:$0xff] %vm8, %v648
  %681 = vst.msk [vmem:[%s1 + $0xa0] sm:$0xff] %vm8, %v649
  %682 = vst.msk [vmem:[%s1 + $0xa8] sm:$0xff] %vm8, %v650
  %683 = vst.msk [vmem:[%s1 + $0xb0] sm:$0xff] %vm8, %v651
  %684 = vst.msk [vmem:[%s1 + $0xb8] sm:$0xff] %vm8, %v652
  %685 = vst.msk [vmem:[%s1 + $0xc0] sm:$0xff] %vm8, %v653
  %686 = vst.msk [vmem:[%s1 + $0xc8] sm:$0xff] %vm8, %v654
  %687 = vst.msk [vmem:[%s1 + $0xd0] sm:$0xff] %vm8, %v655
  %688 = vst.msk [vmem:[%s1 + $0xd8] sm:$0xff] %vm8, %v656
  %689 = vst.msk [vmem:[%s1 + $0xe0] sm:$0xff] %vm8, %v657
  %690 = vst.msk [vmem:[%s1 + $0xe8] sm:$0xff] %vm8, %v658
  %691 = vst.msk [vmem:[%s1 + $0xf0] sm:$0xff] %vm8, %v659
  %692 = vst.msk [vmem:[%s1 + $0xf8] sm:$0xff] %vm8, %v660
  // Predicated region
  $region6: #{pooling_block.1} parent=0 // pred_check
    _
  $region7: #{pooling_block.1} parent=0 // pred_check_branch
    %694 = sbr.rel (0) target = $region9
  $region8: #{pooling_block.1} parent=0 // pred_region
    _
  $region9: #{pooling_block.1} parent=0 // pred_fallthru
    _
  // Predicated region
  $region10: #{pooling_block.1} parent=0 // pred_check
    _
  $region11: #{pooling_block.1} parent=0 // pred_check_branch
    %696 = sbr.rel (0) target = $region13
  $region12: #{pooling_block.1} parent=0 // pred_region
    _
  $region13: #{pooling_block.1} parent=0 // pred_fallthru
    _

</llo_original>
